<compile_context>
chip_gen: v7x
topology: tpu7x:2x2x1
jax: 0.10.0
libtpu: 0.0.40
codegen_flags: <defaults>
</compile_context>

<pallas_src>
import functools

import jax
import jax.numpy as jnp
from jax import lax
from jax.experimental import pallas as pl
from jax.experimental.pallas import tpu as pltpu

_VMEM_LIMIT = 32 * 1024 * 1024  # safe explicit scoped-VMEM limit on v5e/v6e/v7x


def _pick_tile(n, preferred=(256, 512, 128)):
    """Largest preferred tile that evenly divides n, else the full extent."""
    for t in preferred:
        if n >= t and n % t == 0:
            return t
    return n


# --------------------------------------------------------------------------
# Flash-style attention (Attention.forward)
# --------------------------------------------------------------------------
def _flash_attn_kernel(q_ref, k_ref, v_ref, o_ref, m_sc, l_sc, acc_sc, *, scale):
    j = pl.program_id(2)

    @pl.when(j == 0)
    def _():
        m_sc[...] = jnp.full_like(m_sc, -jnp.inf)
        l_sc[...] = jnp.zeros_like(l_sc)
        acc_sc[...] = jnp.zeros_like(acc_sc)

    # Pre-scale Q (Lq*D multiplies instead of Lq*Lk); keep native dtype into
    # the MXU, accumulate in f32.  Contract K on its last dim (no transpose).
    q = q_ref[...] * scale
    s = lax.dot_general(q, k_ref[...], (((1,), (1,)), ((), ())),
                        preferred_element_type=jnp.float32)          # (tq, tk)

    m_prev = m_sc[...]
    m_new = jnp.maximum(m_prev, jnp.max(s, axis=-1, keepdims=True))
    alpha = jnp.exp(m_prev - m_new)
    p = jnp.exp(s - m_new)
    l_sc[...] = alpha * l_sc[...] + jnp.sum(p, axis=-1, keepdims=True)
    acc_sc[...] = alpha * acc_sc[...] + jnp.dot(
        p.astype(v_ref.dtype), v_ref[...], preferred_element_type=jnp.float32)
    m_sc[...] = m_new

    @pl.when(j == pl.num_programs(2) - 1)
    def _():
        # reciprocal runs once per (tq, 1) tile at finalize -> keep exact form.
        o_ref[...] = (acc_sc[...] *
                      pl.reciprocal(l_sc[...], approx=False)).astype(o_ref.dtype)


def _flash_attn_kernel_masked(q_ref, k_ref, v_ref, m_ref, o_ref,
                              m_sc, l_sc, acc_sc, *, scale):
    j = pl.program_id(2)

    @pl.when(j == 0)
    def _():
        m_sc[...] = jnp.full_like(m_sc, -jnp.inf)
        l_sc[...] = jnp.zeros_like(l_sc)
        acc_sc[...] = jnp.zeros_like(acc_sc)

    q = q_ref[...] * scale
    s = lax.dot_general(q, k_ref[...], (((1,), (1,)), ((), ())),
                        preferred_element_type=jnp.float32)          # (tq, tk)
    # torch does masked_fill_(-inf) before / sqrt(dk); -inf is invariant under
    # the positive scale, so applying it after pre-scaled Q is identical.
    s = jnp.where(m_ref[...] != 0, -jnp.inf, s)

    m_prev = m_sc[...]
    m_new = jnp.maximum(m_prev, jnp.max(s, axis=-1, keepdims=True))
    # Guard rows fully masked *so far*: m_new == -inf would give nan and poison
    # later tiles.  With the guard, alpha/p stay exactly 0 for those rows; rows
    # masked in every tile still end with l == 0 and produce nan, matching
    # torch masked_fill(-inf) + softmax semantics.
    m_adj = jnp.where(m_new == -jnp.inf, 0.0, m_new)
    alpha = jnp.exp(m_prev - m_adj)
    p = jnp.exp(s - m_adj)
    l_sc[...] = alpha * l_sc[...] + jnp.sum(p, axis=-1, keepdims=True)
    acc_sc[...] = alpha * acc_sc[...] + jnp.dot(
        p.astype(v_ref.dtype), v_ref[...], preferred_element_type=jnp.float32)
    m_sc[...] = m_new

    @pl.when(j == pl.num_programs(2) - 1)
    def _():
        o_ref[...] = (acc_sc[...] *
                      pl.reciprocal(l_sc[...], approx=False)).astype(o_ref.dtype)


def flash_attention(q, k, v, mask=None, dk=64):
    """Pallas equivalent of Attention.forward: softmax(QK^T / sqrt(dk)) V."""
    bh, lq, d = q.shape
    _, lk, dv = v.shape
    assert k.shape == (bh, lk, d)
    scale = 1.0 / float(dk) ** 0.5

    tq = _pick_tile(lq)
    tk = _pick_tile(lk)
    grid = (bh, lq // tq, lk // tk)

    q_spec = pl.BlockSpec((None, tq, d), lambda b, i, j: (b, i, 0))
    k_spec = pl.BlockSpec((None, tk, d), lambda b, i, j: (b, j, 0))
    v_spec = pl.BlockSpec((None, tk, dv), lambda b, i, j: (b, j, 0))
    o_spec = pl.BlockSpec((None, tq, dv), lambda b, i, j: (b, i, 0))

    scratch = [pltpu.VMEM((tq, 1), jnp.float32),   # running max m
               pltpu.VMEM((tq, 1), jnp.float32),   # running sum l
               pltpu.VMEM((tq, dv), jnp.float32)]  # output accumulator
    out_shape = jax.ShapeDtypeStruct((bh, lq, dv), q.dtype)
    cparams = pltpu.CompilerParams(
        dimension_semantics=("parallel", "parallel", "arbitrary"),
        vmem_limit_bytes=_VMEM_LIMIT)

    if mask is None:
        kernel = functools.partial(_flash_attn_kernel, scale=scale)
        return pl.pallas_call(
            kernel,
            out_shape=out_shape,
            grid_spec=pltpu.PrefetchScalarGridSpec(
                num_scalar_prefetch=0, grid=grid,
                in_specs=[q_spec, k_spec, v_spec],
                out_specs=o_spec,
                scratch_shapes=scratch),
            compiler_params=cparams,
        )(q, k, v)

    assert mask.shape == (bh, lq, lk)
    m_spec = pl.BlockSpec((None, tq, tk), lambda b, i, j: (b, i, j))
    kernel = functools.partial(_flash_attn_kernel_masked, scale=scale)
    return pl.pallas_call(
        kernel,
        out_shape=out_shape,
        grid_spec=pltpu.PrefetchScalarGridSpec(
            num_scalar_prefetch=0, grid=grid,
            in_specs=[q_spec, k_spec, v_spec, m_spec],
            out_specs=o_spec,
            scratch_shapes=scratch),
        compiler_params=cparams,
    )(q, k, v, mask.astype(jnp.int8))   # int8 mask: 4x less DMA/VMEM vs int32


# --------------------------------------------------------------------------
# LayerNorm
# --------------------------------------------------------------------------
def _layernorm_kernel(x_ref, g_ref, b_ref, o_ref, *, eps):
    x = x_ref[...].astype(jnp.float32)
    mu = jnp.mean(x, axis=-1, keepdims=True)
    xc = x - mu
    var = jnp.mean(xc * xc, axis=-1, keepdims=True)
    y = xc * lax.rsqrt(var + eps)
    y = y * g_ref[...].astype(jnp.float32) + b_ref[...].astype(jnp.float32)
    o_ref[...] = y.astype(o_ref.dtype)


def layernorm(x, gamma, beta, eps=1e-5):
    orig_shape = x.shape
    d = orig_shape[-1]
    x2 = x.reshape(-1, d)
    n = x2.shape[0]
    tn = _pick_tile(n)
    out = pl.pallas_call(
        functools.partial(_layernorm_kernel, eps=eps),
        out_shape=jax.ShapeDtypeStruct((n, d), x.dtype),
        grid_spec=pltpu.PrefetchScalarGridSpec(
            num_scalar_prefetch=0, grid=(n // tn,),
            in_specs=[pl.BlockSpec((tn, d), lambda i: (i, 0)),
                      pl.BlockSpec((1, d), lambda i: (0, 0)),
                      pl.BlockSpec((1, d), lambda i: (0, 0))],
            out_specs=pl.BlockSpec((tn, d), lambda i: (i, 0))),
        compiler_params=pltpu.CompilerParams(
            dimension_semantics=("parallel",),
            vmem_limit_bytes=_VMEM_LIMIT),
    )(x2, gamma.reshape(1, d), beta.reshape(1, d))
    return out.reshape(orig_shape)


# --------------------------------------------------------------------------
# Linear (no bias) and fused FFN
# --------------------------------------------------------------------------
def _linear_kernel(x_ref, w_ref, o_ref):
    o_ref[...] = jnp.dot(x_ref[...], w_ref[...],
                         preferred_element_type=jnp.float32).astype(o_ref.dtype)


def linear(x, w_t):
    """y = x @ w_t  (w_t is the (d_in, d_out) pre-transposed nn.Linear weight)."""
    orig_shape = x.shape
    d_in, d_out = w_t.shape
    x2 = x.reshape(-1, d_in)
    n = x2.shape[0]
    tn = _pick_tile(n)
    out = pl.pallas_call(
        _linear_kernel,
        out_shape=jax.ShapeDtypeStruct((n, d_out), x.dtype),
        grid_spec=pltpu.PrefetchScalarGridSpec(
            num_scalar_prefetch=0, grid=(n // tn,),
            in_specs=[pl.BlockSpec((tn, d_in), lambda i: (i, 0)),
                      pl.BlockSpec((d_in, d_out), lambda i: (0, 0))],
            out_specs=pl.BlockSpec((tn, d_out), lambda i: (i, 0))),
        compiler_params=pltpu.CompilerParams(
            dimension_semantics=("parallel",),
            vmem_limit_bytes=_VMEM_LIMIT),
    )(x2, w_t)
    return out.reshape(orig_shape[:-1] + (d_out,))


def _ffn_kernel(x_ref, w1_ref, b1_ref, w2_ref, b2_ref, o_ref, *, leaky):
    h = jnp.dot(x_ref[...], w1_ref[...], preferred_element_type=jnp.float32)
    h = h + b1_ref[...].astype(jnp.float32)
    if leaky:
        h = jnp.where(h > 0, h, 0.01 * h)
    else:
        h = jnp.maximum(h, 0.0)
    y = jnp.dot(h.astype(w2_ref.dtype), w2_ref[...],
                preferred_element_type=jnp.float32)
    y = y + b2_ref[...].astype(jnp.float32)
    o_ref[...] = y.astype(o_ref.dtype)


def ffn(x, w1_t, b1, w2_t, b2, use_leaky_relu=False):
    orig_shape = x.shape
    d_in, d_hid = w1_t.shape
    d_out = w2_t.shape[1]
    x2 = x.reshape(-1, d_in)
    n = x2.shape[0]
    tn = _pick_tile(n)
    out = pl.pallas_call(
        functools.partial(_ffn_kernel, leaky=use_leaky_relu),
        out_shape=jax.ShapeDtypeStruct((n, d_out), x.dtype),
        grid_spec=pltpu.PrefetchScalarGridSpec(
            num_scalar_prefetch=0, grid=(n // tn,),
            in_specs=[pl.BlockSpec((tn, d_in), lambda i: (i, 0)),
                      pl.BlockSpec((d_in, d_hid), lambda i: (0, 0)),
                      pl.BlockSpec((1, d_hid), lambda i: (0, 0)),
                      pl.BlockSpec((d_hid, d_out), lambda i: (0, 0)),
                      pl.BlockSpec((1, d_out), lambda i: (0, 0))],
            out_specs=pl.BlockSpec((tn, d_out), lambda i: (i, 0))),
        compiler_params=pltpu.CompilerParams(
            dimension_semantics=("parallel",),
            vmem_limit_bytes=_VMEM_LIMIT),
    )(x2, w1_t, b1.reshape(1, d_hid), w2_t, b2.reshape(1, d_out))
    return out.reshape(orig_shape[:-1] + (d_out,))


# --------------------------------------------------------------------------
# MultiHead + EncoderBlock wrappers
# --------------------------------------------------------------------------
def multihead_attention(q_in, k_in, v_in, mask, w_q_t, w_out_t, num_heads):
    """Pallas equivalent of MultiHead.forward.

    NOTE: the reference PyTorch module projects Q, K and V all with Q_Linear;
    that behaviour is reproduced faithfully (single shared projection weight).
    """
    b, l, d_model = q_in.shape
    d_head = d_model // num_heads

    qp = linear(q_in, w_q_t)
    kp = linear(k_in, w_q_t)
    vp = linear(v_in, w_q_t)

    def split_heads(t):
        # torch: .split(d_head, dim=-1) then cat(dim=0)
        #   -> head h occupies batch rows [h*b, (h+1)*b)
        return (t.reshape(b, l, num_heads, d_head)
                 .transpose(2, 0, 1, 3)
                 .reshape(num_heads * b, l, d_head))

    qh, kh, vh = split_heads(qp), split_heads(kp), split_heads(vp)
    mh = None if mask is None else jnp.tile(mask, (num_heads, 1, 1))

    c = flash_attention(qh, kh, vh, mh, dk=d_head)          # (H*B, L, d_head)

    c = (c.reshape(num_heads, b, l, d_head)
          .transpose(1, 2, 0, 3)
          .reshape(b, l, d_model))
    return linear(c, w_out_t)


def encoder_block(x, mask, params, num_heads, use_leaky_relu=False):
    """Pallas equivalent of EncoderBlock.forward (eval mode)."""
    z = layernorm(x, params["ln_attn_g"], params["ln_attn_b"])
    attn = multihead_attention(z, z, z, mask,
                               params["w_q_t"], params["w_out_t"], num_heads)
    # TODO(synk): attn_dropout / fc_dropout are identity here (eval-mode forward).
    z = x + attn
    h = layernorm(z, params["ln_fc_g"], params["ln_fc_b"])
    z = z + ffn(h, params["w_fc1_t"], params["b_fc1"],
                params["w_fc2_t"], params["b_fc2"], use_leaky_relu)
    return z, mask


# --------------------------------------------------------------------------
# Pure-JAX reference + test
# --------------------------------------------------------------------------
def _reference_encoder_block(x, mask, params, num_heads,
                             use_leaky_relu=False, eps=1e-5):
    def ln(t, g, b):
        mu = jnp.mean(t, axis=-1, keepdims=True)
        var = jnp.mean((t - mu) ** 2, axis=-1, keepdims=True)
        return (t - mu) / jnp.sqrt(var + eps) * g + b

    b_, l, d_model = x.shape
    d_head = d_model // num_heads

    z = ln(x, params["ln_attn_g"], params["ln_attn_b"])
    qp = z @ params["w_q_t"]
    kp = z @ params["w_q_t"]
    vp = z @ params["w_q_t"]

    def split_heads(t):
        return (t.reshape(b_, l, num_heads, d_head)
                 .transpose(2, 0, 1, 3)
                 .reshape(num_heads * b_, l, d_head))

    qh, kh, vh = split_heads(qp), split_heads(kp), split_heads(vp)
    w = jnp.einsum('bqd,bkd->bqk', qh, kh)
    if mask is not None:
        w = jnp.where(jnp.tile(mask, (num_heads, 1, 1)), -jnp.inf, w)
    w = jax.nn.softmax(w / (d_head ** 0.5), axis=-1)
    c = jnp.einsum('bqk,bkd->bqd', w, vh)
    c = (c.reshape(num_heads, b_, l, d_head)
          .transpose(1, 2, 0, 3)
          .reshape(b_, l, d_model))
    attn = c @ params["w_out_t"]

    z1 = x + attn
    h = ln(z1, params["ln_fc_g"], params["ln_fc_b"])
    h1 = h @ params["w_fc1_t"] + params["b_fc1"]
    h1 = jnp.where(h1 > 0, h1, 0.01 * h1) if use_leaky_relu else jnp.maximum(h1, 0.0)
    f = h1 @ params["w_fc2_t"] + params["b_fc2"]
    return z1 + f, mask


if __name__ == "__main__":
    key = jax.random.PRNGKey(0)
    keys = jax.random.split(key, 8)

    B, L, D_MODEL, NUM_HEADS = 2, 8, 32, 4
    D_FF = 4 * D_MODEL

    x = jax.random.normal(keys[0], (B, L, D_MODEL), dtype=jnp.float32)
    mask = jax.random.bernoulli(keys[1], p=0.25, shape=(B, L, L))
    # keep the diagonal unmasked so no row is fully masked (a fully masked row
    # is nan under torch masked_fill(-inf)+softmax, not useful to compare).
    eye = jnp.eye(L, dtype=bool)[None]
    mask = jnp.where(eye, False, mask)

    s = 0.1
    params = {
        "ln_attn_g": jnp.ones((D_MODEL,), jnp.float32),
        "ln_attn_b": jnp.zeros((D_MODEL,), jnp.float32),
        "ln_fc_g": jnp.ones((D_MODEL,), jnp.float32),
        "ln_fc_b": jnp.zeros((D_MODEL,), jnp.float32),
        # weights stored pre-transposed to (d_in, d_out)
        "w_q_t": s * jax.random.normal(keys[2], (D_MODEL, D_MODEL), jnp.float32),
        "w_out_t": s * jax.random.normal(keys[3], (D_MODEL, D_MODEL), jnp.float32),
        "w_fc1_t": s * jax.random.normal(keys[4], (D_MODEL, D_FF), jnp.float32),
        "b_fc1": s * jax.random.normal(keys[5], (D_FF,), jnp.float32),
        "w_fc2_t": s * jax.random.normal(keys[6], (D_FF, D_MODEL), jnp.float32),
        "b_fc2": s * jax.random.normal(keys[7], (D_MODEL,), jnp.float32),
    }

    out, out_mask = encoder_block(x, mask, params, NUM_HEADS)
    jax.block_until_ready(out)
    ref, _ = _reference_encoder_block(x, mask, params, NUM_HEADS)
    err = float(jnp.max(jnp.abs(out - ref)))
    assert jnp.allclose(out, ref, atol=1e-4, rtol=1e-4), f"masked mismatch, max err {err}"

    out_nm, _ = encoder_block(x, None, params, NUM_HEADS)
    jax.block_until_ready(out_nm)
    ref_nm, _ = _reference_encoder_block(x, None, params, NUM_HEADS)
    assert jnp.allclose(out_nm, ref_nm, atol=1e-4, rtol=1e-4), "no-mask mismatch"

    print("KERNEL_OK")
</pallas_src>

<mosaic_0001>
module attributes {stable_mosaic.version = 11 : i64} {
  func.func @_layernorm_kernel(%arg0: i32, %arg1: memref<16x32xf32, #tpu.memory_space<vmem>>, %arg2: memref<1x32xf32, #tpu.memory_space<vmem>>, %arg3: memref<1x32xf32, #tpu.memory_space<vmem>>, %arg4: memref<16x32xf32, #tpu.memory_space<vmem>>) attributes {dimension_semantics = [#tpu.dimension_semantics<parallel>], iteration_bounds = array<i64: 1>, scalar_prefetch = 0 : i64, scratch_operands = 0 : i64, tpu.core_type = #tpu.core_type<tc>, window_params = [{transform_indices = @transform_0, window_bounds = array<i64: 16, 32>}, {pipeline_mode = #tpu.pipeline_mode<synchronous>, transform_indices = @transform_1, window_bounds = array<i64: 1, 32>}, {pipeline_mode = #tpu.pipeline_mode<synchronous>, transform_indices = @transform_2, window_bounds = array<i64: 1, 32>}, {transform_indices = @transform_3, window_bounds = array<i64: 16, 32>}]} {
    %c0 = arith.constant 0 : index
    %c0_0 = arith.constant 0 : index
    %0 = vector.load %arg1[%c0, %c0_0] : memref<16x32xf32, #tpu.memory_space<vmem>>, vector<16x32xf32>
    %cst = arith.constant dense<0.000000e+00> : vector<16xf32>
    %1 = vector.multi_reduction <add>, %0, %cst [1] : vector<16x32xf32> to vector<16xf32>
    %2 = vector.shape_cast %1 : vector<16xf32> to vector<16x1xf32>
    %cst_1 = arith.constant 3.200000e+01 : f32
    %3 = vector.broadcast %cst_1 : f32 to vector<16x1xf32>
    %4 = arith.divf %2, %3 : vector<16x1xf32>
    %5 = vector.broadcast %4 : vector<16x1xf32> to vector<16x32xf32>
    %6 = arith.subf %0, %5 : vector<16x32xf32>
    %7 = arith.mulf %6, %6 : vector<16x32xf32>
    %cst_2 = arith.constant dense<0.000000e+00> : vector<16xf32>
    %8 = vector.multi_reduction <add>, %7, %cst_2 [1] : vector<16x32xf32> to vector<16xf32>
    %9 = vector.shape_cast %8 : vector<16xf32> to vector<16x1xf32>
    %cst_3 = arith.constant 3.200000e+01 : f32
    %10 = vector.broadcast %cst_3 : f32 to vector<16x1xf32>
    %11 = arith.divf %9, %10 : vector<16x1xf32>
    %cst_4 = arith.constant 9.99999974E-6 : f32
    %12 = vector.broadcast %cst_4 : f32 to vector<16x1xf32>
    %13 = arith.addf %11, %12 : vector<16x1xf32>
    %14 = math.rsqrt %13 : vector<16x1xf32>
    %15 = vector.broadcast %14 : vector<16x1xf32> to vector<16x32xf32>
    %16 = arith.mulf %6, %15 : vector<16x32xf32>
    %c0_5 = arith.constant 0 : index
    %c0_6 = arith.constant 0 : index
    %17 = vector.load %arg2[%c0_5, %c0_6] : memref<1x32xf32, #tpu.memory_space<vmem>>, vector<1x32xf32>
    %18 = vector.broadcast %17 : vector<1x32xf32> to vector<16x32xf32>
    %19 = arith.mulf %16, %18 : vector<16x32xf32>
    %c0_7 = arith.constant 0 : index
    %c0_8 = arith.constant 0 : index
    %20 = vector.load %arg3[%c0_7, %c0_8] : memref<1x32xf32, #tpu.memory_space<vmem>>, vector<1x32xf32>
    %21 = vector.broadcast %20 : vector<1x32xf32> to vector<16x32xf32>
    %22 = arith.addf %19, %21 : vector<16x32xf32>
    %c0_9 = arith.constant 0 : index
    %c0_10 = arith.constant 0 : index
    %23 = vector.load %arg4[%c0_9, %c0_10] : memref<16x32xf32, #tpu.memory_space<vmem>>, vector<16x32xf32>
    tpu.vector_store %arg4[%c0_9, %c0_10], %22 {strides = array<i32>} : memref<16x32xf32, #tpu.memory_space<vmem>>, vector<16x32xf32>,
    return
  }
  func.func @transform_0(%arg0: i32) -> (i32, i32) {
    %c0_i32 = arith.constant 0 : i32
    %c0_i32_0 = arith.constant 0 : i32
    return %arg0, %c0_i32 : i32, i32
  }
  func.func @transform_1(%arg0: i32) -> (i32, i32) {
    %c0_i32 = arith.constant 0 : i32
    %c0_i32_0 = arith.constant 0 : i32
    %c0_i32_1 = arith.constant 0 : i32
    return %c0_i32, %c0_i32_0 : i32, i32
  }
  func.func @transform_2(%arg0: i32) -> (i32, i32) {
    %c0_i32 = arith.constant 0 : i32
    %c0_i32_0 = arith.constant 0 : i32
    %c0_i32_1 = arith.constant 0 : i32
    return %c0_i32, %c0_i32_0 : i32, i32
  }
  func.func @transform_3(%arg0: i32) -> (i32, i32) {
    %c0_i32 = arith.constant 0 : i32
    %c0_i32_0 = arith.constant 0 : i32
    return %arg0, %c0_i32 : i32, i32
  }
}

</mosaic_0001>

<llo_original>
// kernel: tpu_custom_call.1
$region0: #{tpu_custom_call.1}
  #allocation0 [shape = 'u32[]', space=smem, size = 0x4, offset = 0x4, fixed_abs, tag = 'smem constant byte address 0x4 - core index']
  #allocation1 [shape = 'u32[144,128]{1,0:T(1,128)}', space=vmem, size = 0x12000, scoped, tag = 'internal scratch']
  %s0 = inlined_call_operand.hbm [shape: f32[16,32], index: 0, kind: input, shape index: {}]
  %s1 = inlined_call_operand.vmem [shape: f32[1,32], index: 1, kind: input, shape index: {}]
  %s2 = inlined_call_operand.vmem [shape: f32[1,32], index: 2, kind: input, shape index: {}]
  %s3 = inlined_call_operand.hbm [shape: f32[16,32], index: 3, kind: output, shape index: {}]
  %s4 = sld [smem:[#allocation0]]
  $region26: #{tpu_custom_call.1} parent=0
    _
  %s6 = ssub.s32 1, %s4
  %s7 = scalar_select 0, %s6, %s4
  $region1: #{tpu_custom_call.1} parent=0
    #allocation2 [shape = 'u8[8192]{0}', space=vmem, size = 0x2000, scoped, tag = 'input window, operand 0, single buffered']
    #allocation3 [shape = 's32[1]{0}', space=sflag, size = 0x4, scoped, tag = 'scoped memory for tpu_custom_call.1']
    #allocation4 [shape = 's32[1]{0}', space=sflag, size = 0x4, scoped, tag = 'scoped memory for tpu_custom_call.1']
    #allocation5 [shape = 'u8[8192]{0}', space=vmem, size = 0x2000, scoped, tag = 'output window, operand 0, single buffered']
    %8 = vsyncpa [#allocation3], 0
    %9 = vsyncpa [#allocation4], 0
    // Predicated region
    $region2: #{tpu_custom_call.1} parent=1 // pred_check
      _
    $region3: #{tpu_custom_call.1} parent=1 // pred_check_branch
      %11 = sbr.rel (0) target = $region5
    $region4: #{tpu_custom_call.1} parent=1 // pred_region
      %s13 = ssub.s32 256, 256
      %14 = vsyncadd [#allocation3], %s13
      %s15 = sshll.u32 [#allocation2], 4
      %s16 = int_to_ptr.vmem [resolvable:$true] %s15
      %21 = dma.hbm_to_vmem [thread:$0]  %s0, 256, %s16, [#allocation3], 128, 128, 8
    $region5: #{tpu_custom_call.1} parent=1 // pred_fallthru
      _
    // Predicated region
    $region6: #{tpu_custom_call.1} parent=1 // pred_check
      _
    $region7: #{tpu_custom_call.1} parent=1 // pred_check_branch
      %23 = sbr.rel (0) target = $region9
    $region8: #{tpu_custom_call.1} parent=1 // pred_region
      _
    $region9: #{tpu_custom_call.1} parent=1 // pred_fallthru
      _
    // Predicated region
    $region10: #{tpu_custom_call.1} parent=1 // pred_check
      _
    $region11: #{tpu_custom_call.1} parent=1 // pred_check_branch
      %25 = sbr.rel (0) target = $region13
    $region12: #{tpu_custom_call.1} parent=1 // pred_region
      _
    $region13: #{tpu_custom_call.1} parent=1 // pred_fallthru
      _
    // Predicated region
    $region14: #{tpu_custom_call.1} parent=1 // pred_check
      _
    $region15: #{tpu_custom_call.1} parent=1 // pred_check_branch
      %27 = sbr.rel (0) target = $region17
    $region16: #{tpu_custom_call.1} parent=1 // pred_region
      %28 = dma.done [#allocation3], 256
    $region17: #{tpu_custom_call.1} parent=1 // pred_fallthru
      _
    %v29 = vld [vmem:[#allocation2] sm:$0xff]
    %v30 = vld [vmem:[#allocation2 + $0x8] sm:$0xff]
    %vm31 = vcmask 261120
    %v32 = vsel %vm31, %v29, 0.0
    %33 = vadd.xlane.f32.xlu0 %v32
    %v34 = vpop.xlane.xlu0 %33
    %v35 = vsel %vm31, %v30, 0.0
    %36 = vadd.xlane.f32.xlu0 %v35
    %v37 = vpop.xlane.xlu0 %36
    %v38 = vrcp.pop 32.0
    %v39 = vmul.f32 %v34, %v38
    %v40 = vmul.f32 %v37, %v38
    %v41 = vsub.f32 %v29, %v39
    %v42 = vsub.f32 %v30, %v40
    %v43 = vmul.f32 %v41, %v41
    %v44 = vmul.f32 %v42, %v42
    %v45 = vsel %vm31, %v43, 0.0
    %46 = vadd.xlane.f32.xlu0 %v45
    %v47 = vpop.xlane.xlu0 %46
    %v48 = vsel %vm31, %v44, 0.0
    %49 = vadd.xlane.f32.xlu0 %v48
    %v50 = vpop.xlane.xlu0 %49
    %v51 = vmul.f32 %v47, %v38
    %v52 = vmul.f32 %v50, %v38
    %v53 = vadd.f32 %v51, 1e-05
    %v54 = vadd.f32 %v52, 1e-05
    %v55 = vrsqrt.pop %v53
    %v56 = vrsqrt.pop %v54
    %v57 = vmul.f32 %v41, %v55
    %v58 = vmul.f32 %v42, %v56
    %v59 = vld [vmem:[%s1] sm:$0x1]
    %v61 = vlaneseq
    %v62 = vshrl.u32 %v61, 7
    %v63 = vsub.s32 0, %v62
    %v64 = vrot.slane %v59, %v63
    %v66 = vmul.f32 %v57, %v64
    %v67 = vmul.f32 %v58, %v64
    %v68 = vld [vmem:[%s2] sm:$0x1]
    %v70 = vlaneseq
    %v71 = vshrl.u32 %v70, 7
    %v72 = vsub.s32 0, %v71
    %v73 = vrot.slane %v68, %v72
    %v75 = vadd.f32 %v66, %v73
    %v76 = vadd.f32 %v67, %v73
    %77 = vst.msk [vmem:[#allocation5] sm:$0xff] %vm31, %v75
    %78 = vst.msk [vmem:[#allocation5 + $0x8] sm:$0xff] %vm31, %v76
    // Predicated region
    $region18: #{tpu_custom_call.1} parent=1 // pred_check
      _
    $region19: #{tpu_custom_call.1} parent=1 // pred_check_branch
      %80 = sbr.rel (0) target = $region21
    $region20: #{tpu_custom_call.1} parent=1 // pred_region
      %s82 = ssub.s32 256, 256
      %83 = vsyncadd [#allocation4], %s82
      %s84 = sshll.u32 [#allocation5], 4
      %s85 = int_to_ptr.vmem [resolvable:$true] %s84
      %90 = dma.vmem_to_hbm [thread:$0]  %s85, 256, %s3, [#allocation4], 128, 128, 8
    $region21: #{tpu_custom_call.1} parent=1 // pred_fallthru
      _
    // Predicated region
    $region22: #{tpu_custom_call.1} parent=1 // pred_check
      _
    $region23: #{tpu_custom_call.1} parent=1 // pred_check_branch
      %92 = sbr.rel (0) target = $region25
    $region24: #{tpu_custom_call.1} parent=1 // pred_region
      %93 = dma.done [#allocation4], 256
    $region25: #{tpu_custom_call.1} parent=1 // pred_fallthru
      _
    %94 = vsyncpa [#allocation3], 1
    %95 = vsyncpa [#allocation4], 1

</llo_original>
